<compile_context>
chip_gen: v5e
topology: v5e:2x2
jax: 0.10.0
libtpu: 0.0.40
codegen_flags: <defaults>
</compile_context>

<pallas_src>
import jax
import jax.numpy as jnp
import numpy as np
from jax.experimental import pallas as pl
from jax.experimental.pallas import tpu as pltpu

_EPS = 1e-12  # matches torch.nn.functional.normalize default eps
_LANE = 128


# --------------------------------------------------------------------------
# Kernel (templated on which outputs are requested)
# --------------------------------------------------------------------------
def _make_kernel(want_normals, want_fff, want_cmean, want_cgauss):
    need_curv = want_cmean or want_cgauss
    need_n = want_normals or need_curv
    need_g = want_fff or need_curv

    def kernel(in_ref, out_ref):
        # in_ref : (n_in, block_rows, 128)
        #          planes: xu(3), xv(3) [, xuu(3), xuv(3), xvv(3)]
        # out_ref: (n_out, block_rows, 128)
        #          planes (in order, only if requested):
        #          normals(3), fff(3), cmean(1), cgauss(1)
        xu0, xu1, xu2 = in_ref[0], in_ref[1], in_ref[2]
        xv0, xv1, xv2 = in_ref[3], in_ref[4], in_ref[5]

        o = 0
        if need_n:
            # normals = normalize(xu x xv)   (torch.cross, F.normalize p=2)
            c0 = xu1 * xv2 - xu2 * xv1
            c1 = xu2 * xv0 - xu0 * xv2
            c2 = xu0 * xv1 - xu1 * xv0
            nsq = c0 * c0 + c1 * c1 + c2 * c2
            # 1/max(||c||, eps) == rsqrt(max(||c||^2, eps^2)); rsqrt -> EUP.
            inv_norm = jax.lax.rsqrt(jnp.maximum(nsq, _EPS * _EPS))
            n0 = c0 * inv_norm
            n1 = c1 * inv_norm
            n2 = c2 * inv_norm
        if want_normals:
            out_ref[o] = n0
            out_ref[o + 1] = n1
            out_ref[o + 2] = n2
            o += 3

        if need_g:
            # first fundamental form g = J^T J  ->  (E, F, G)
            gE = xu0 * xu0 + xu1 * xu1 + xu2 * xu2
            gF = xu0 * xv0 + xu1 * xv1 + xu2 * xv2
            gG = xv0 * xv0 + xv1 * xv1 + xv2 * xv2
        if want_fff:
            out_ref[o] = gE
            out_ref[o + 1] = gF
            out_ref[o + 2] = gG
            o += 3

        if need_curv:
            # 2nd derivatives read at their point of use.
            xuu0, xuu1, xuu2 = in_ref[6], in_ref[7], in_ref[8]
            xuv0, xuv1, xuv2 = in_ref[9], in_ref[10], in_ref[11]
            xvv0, xvv1, xvv2 = in_ref[12], in_ref[13], in_ref[14]

        if want_cmean:
            # 0.5 * sum_i -n_i / detg * (xuu_i*G - 2*xuv_i*F + xvv_i*E)
            # (no eps clamp on detg -- matches the reference module verbatim)
            inv_detg = 1.0 / (gE * gG - gF * gF)
            t0 = xuu0 * gG - 2.0 * xuv0 * gF + xvv0 * gE
            t1 = xuu1 * gG - 2.0 * xuv1 * gF + xvv1 * gE
            t2 = xuu2 * gG - 2.0 * xuv2 * gF + xvv2 * gE
            out_ref[o] = -0.5 * inv_detg * (n0 * t0 + n1 * t1 + n2 * t2)
            o += 1

        if want_cgauss:
            # denominator (E*F - G^2) reproduces the reference module verbatim
            iiL = xuu0 * n0 + xuu1 * n1 + xuu2 * n2
            iiM = xuv0 * n0 + xuv1 * n1 + xuv2 * n2
            iiN = xvv0 * n0 + xvv1 * n1 + xvv2 * n2
            out_ref[o] = (iiL * iiN - iiM * iiM) / (gE * gF - gG * gG)
            o += 1

    return kernel


# --------------------------------------------------------------------------
# Derivative planes (glue; replaces torch.autograd.grad in DiffGeomProps.df)
# --------------------------------------------------------------------------
def _derivative_planes(f_point, uv_flat, need_second):
    """(n_in, Npts) derivative planes, point axis minor (lane-dense).

    Plane order matches the kernel: xu(3), xv(3) [, xuu(3), xuv(3), xvv(3)].
    """
    jac = jax.jacfwd(f_point)
    if need_second:
        def jac_with_aux(p):
            J = jac(p)                       # (3, 2)
            return J, J                      # differentiate J; also return it

        def per_point(p):
            H, J = jax.jacfwd(jac_with_aux, has_aux=True)(p)  # (3,2,2), (3,2)
            return jnp.concatenate(
                [J[:, 0], J[:, 1],                       # xu, xv
                 H[:, 0, 0], H[:, 0, 1], H[:, 1, 1]])    # xuu, xuv, xvv
    else:
        def per_point(p):
            J = jac(p)
            return jnp.concatenate([J[:, 0], J[:, 1]])

    # out_axes=-1: point axis is the minor (lane) axis of the slab -> the
    # fused vmapped computation writes the (n_in, Npts) slab directly, no
    # separate transpose/stack pass.
    return jax.vmap(per_point, in_axes=0, out_axes=-1)(uv_flat)


# --------------------------------------------------------------------------
# Wrapper
# --------------------------------------------------------------------------
def diff_geom_props(f_point, uv, *, normals=True, curv_mean=True,
                    curv_gauss=True, fff=False, block_rows=256):
    """JAX/Pallas equivalent of DiffGeomProps.forward.

    f_point    : differentiable map (2,) -> (3,)   (the uv -> xyz surface)
    uv         : (B, M, 2) parameter-space points
    block_rows : rows of 128 points per grid step (multiple of 8).
                 Default 256 (~5.75 MiB double-buffered VMEM) is safe on
                 v5e/v6e/v7x; 512 is fine on v6e/v7x if sweeping.
    """
    ret = {}
    if not (normals or curv_mean or curv_gauss or fff):
        return ret

    B, M, _ = uv.shape
    N = B * M
    need_second = curv_mean or curv_gauss
    n_in = 15 if need_second else 6
    n_out = (3 if normals else 0) + (3 if fff else 0) \
        + (1 if curv_mean else 0) + (1 if curv_gauss else 0)

    rows = pl.cdiv(N, _LANE)
    rows8 = -(-rows // 8) * 8
    n_pad = rows8 * _LANE

    # Pad the *points* (edge-replicated) up to a multiple of 8*128, so padded
    # lanes are exactly as non-degenerate as the last real point and the
    # derivative slab is produced at its final padded size (no slab concat).
    uv_flat = uv.reshape(N, 2)
    if n_pad != N:
        uv_flat = jnp.pad(uv_flat, ((0, n_pad - N), (0, 0)), mode="edge")

    # TODO(synk): torch.autograd.grad (DiffGeomProps.df) has no in-kernel
    # Pallas equivalent; the 1st/2nd derivatives of xyz w.r.t. uv are produced
    # here with a single shared jax.jacfwd pass and consumed by the kernel.
    planes = _derivative_planes(f_point, uv_flat, need_second)
    planes = planes.astype(jnp.float32).reshape(n_in, rows8, _LANE)

    # Block sizing: multiple of 8 sublanes, never larger than the problem,
    # and keep >= 2 grid steps when possible (pipelining / v7x megacore).
    br = max(8, -(-int(block_rows) // 8) * 8)
    br = min(br, rows8)
    if rows8 >= 16 and br > rows8 // 2:
        br = max(8, ((rows8 // 2) // 8) * 8)
    grid = (pl.cdiv(rows8, br),)

    out_planes = pl.pallas_call(
        _make_kernel(normals, fff, curv_mean, curv_gauss),
        out_shape=jax.ShapeDtypeStruct((n_out, rows8, _LANE), jnp.float32),
        grid=grid,
        in_specs=[pl.BlockSpec((n_in, br, _LANE), lambda i: (0, i, 0))],
        out_specs=pl.BlockSpec((n_out, br, _LANE), lambda i: (0, i, 0)),
        compiler_params=pltpu.CompilerParams(
            dimension_semantics=("parallel",)),
    )(planes)

    out_flat = out_planes.reshape(n_out, n_pad)
    o = 0
    if normals:
        ret["normals"] = out_flat[o:o + 3, :N].T.reshape(B, M, 3)
        o += 3
    if fff:
        ret["fff"] = out_flat[o:o + 3, :N].T.reshape(B, M, 3)
        o += 3
    if curv_mean:
        ret["cmean"] = out_flat[o, :N].reshape(B, M)
        o += 1
    if curv_gauss:
        ret["cgauss"] = out_flat[o, :N].reshape(B, M)
        o += 1
    return ret


# --------------------------------------------------------------------------
# Pure-JAX reference mirroring the PyTorch module (for the self-test)
# --------------------------------------------------------------------------
def _reference(f_point, uv):
    J = jax.vmap(jax.vmap(jax.jacfwd(f_point)))(uv)
    H = jax.vmap(jax.vmap(jax.jacfwd(jax.jacfwd(f_point))))(uv)
    xu, xv = J[..., 0], J[..., 1]
    n = jnp.cross(xu, xv)
    nn = n / jnp.maximum(jnp.linalg.norm(n, axis=-1, keepdims=True), _EPS)
    gE = jnp.sum(xu * xu, -1)
    gF = jnp.sum(xu * xv, -1)
    gG = jnp.sum(xv * xv, -1)
    fff = jnp.stack([gE, gF, gG], axis=-1)
    detg = gE * gG - gF * gF
    xuu, xuv, xvv = H[..., 0, 0], H[..., 0, 1], H[..., 1, 1]
    cmean = 0.5 * jnp.sum(
        -nn / detg[..., None] * (xuu * gG[..., None]
                                 - 2.0 * xuv * gF[..., None]
                                 + xvv * gE[..., None]), -1)
    iiL = jnp.sum(xuu * nn, -1)
    iiM = jnp.sum(xuv * nn, -1)
    iiN = jnp.sum(xvv * nn, -1)
    cgauss = (iiL * iiN - iiM ** 2) / (gE * gF - gG ** 2)
    return nn, fff, cmean, cgauss


if __name__ == "__main__":
    B, M = 2, 256  # xyz would be (2, 256, 3); uv is (2, 256, 2)

    # deterministic synthetic surface uv -> xyz (stand-in for the upstream
    # differentiable graph that torch.autograd.grad differentiates through)
    def f_point(uv):
        u, v = uv[0], uv[1]
        x = u
        y = v
        z = jnp.sin(u) * jnp.cos(v) + 0.3 * u * u * v
        return jnp.stack([x, y, z])

    key = jax.random.PRNGKey(0)
    uv = jax.random.uniform(key, (B, M, 2), dtype=jnp.float32,
                            minval=-1.0, maxval=1.0)

    nn_ref, fff_ref, cmean_ref, cgauss_ref = _reference(f_point, uv)

    # 1) full output set
    out = diff_geom_props(f_point, uv, fff=True)
    jax.block_until_ready(out)
    np.testing.assert_allclose(np.asarray(out["normals"]), np.asarray(nn_ref),
                               rtol=1e-4, atol=1e-5)
    np.testing.assert_allclose(np.asarray(out["fff"]), np.asarray(fff_ref),
                               rtol=1e-4, atol=1e-5)
    np.testing.assert_allclose(np.asarray(out["cmean"]), np.asarray(cmean_ref),
                               rtol=1e-4, atol=1e-4)
    np.testing.assert_allclose(np.asarray(out["cgauss"]), np.asarray(cgauss_ref),
                               rtol=1e-4, atol=1e-4)
    assert out["normals"].shape == (B, M, 3)
    assert out["fff"].shape == (B, M, 3)
    assert out["cmean"].shape == (B, M)
    assert out["cgauss"].shape == (B, M)

    # 2) gated-output path: only normals + fff (no 2nd derivatives produced)
    out2 = diff_geom_props(f_point, uv, normals=True, curv_mean=False,
                           curv_gauss=False, fff=True)
    jax.block_until_ready(out2)
    np.testing.assert_allclose(np.asarray(out2["normals"]), np.asarray(nn_ref),
                               rtol=1e-4, atol=1e-5)
    np.testing.assert_allclose(np.asarray(out2["fff"]), np.asarray(fff_ref),
                               rtol=1e-4, atol=1e-5)
    assert set(out2.keys()) == {"normals", "fff"}

    print("KERNEL_OK")
</pallas_src>

<mosaic_0001>
module attributes {stable_mosaic.version = 11 : i64} {
  func.func @kernel(%arg0: i32, %arg1: memref<15x8x128xf32, #tpu.memory_space<vmem>>, %arg2: memref<8x8x128xf32, #tpu.memory_space<vmem>>) attributes {dimension_semantics = [#tpu.dimension_semantics<parallel>], iteration_bounds = array<i64: 1>, scalar_prefetch = 0 : i64, scratch_operands = 0 : i64, tpu.core_type = #tpu.core_type<tc>, window_params = [{transform_indices = @transform_0, window_bounds = array<i64: 15, 8, 128>}, {transform_indices = @transform_1, window_bounds = array<i64: 8, 8, 128>}]} {
    %c0 = arith.constant 0 : index
    %c0_0 = arith.constant 0 : index
    %c0_1 = arith.constant 0 : index
    %0 = vector.load %arg1[%c0, %c0_0, %c0_1] : memref<15x8x128xf32, #tpu.memory_space<vmem>>, vector<1x8x128xf32>
    %1 = vector.shape_cast %0 : vector<1x8x128xf32> to vector<8x128xf32>
    %c1 = arith.constant 1 : index
    %c0_2 = arith.constant 0 : index
    %c0_3 = arith.constant 0 : index
    %2 = vector.load %arg1[%c1, %c0_2, %c0_3] : memref<15x8x128xf32, #tpu.memory_space<vmem>>, vector<1x8x128xf32>
    %3 = vector.shape_cast %2 : vector<1x8x128xf32> to vector<8x128xf32>
    %c2 = arith.constant 2 : index
    %c0_4 = arith.constant 0 : index
    %c0_5 = arith.constant 0 : index
    %4 = vector.load %arg1[%c2, %c0_4, %c0_5] : memref<15x8x128xf32, #tpu.memory_space<vmem>>, vector<1x8x128xf32>
    %5 = vector.shape_cast %4 : vector<1x8x128xf32> to vector<8x128xf32>
    %c3 = arith.constant 3 : index
    %c0_6 = arith.constant 0 : index
    %c0_7 = arith.constant 0 : index
    %6 = vector.load %arg1[%c3, %c0_6, %c0_7] : memref<15x8x128xf32, #tpu.memory_space<vmem>>, vector<1x8x128xf32>
    %7 = vector.shape_cast %6 : vector<1x8x128xf32> to vector<8x128xf32>
    %c4 = arith.constant 4 : index
    %c0_8 = arith.constant 0 : index
    %c0_9 = arith.constant 0 : index
    %8 = vector.load %arg1[%c4, %c0_8, %c0_9] : memref<15x8x128xf32, #tpu.memory_space<vmem>>, vector<1x8x128xf32>
    %9 = vector.shape_cast %8 : vector<1x8x128xf32> to vector<8x128xf32>
    %c5 = arith.constant 5 : index
    %c0_10 = arith.constant 0 : index
    %c0_11 = arith.constant 0 : index
    %10 = vector.load %arg1[%c5, %c0_10, %c0_11] : memref<15x8x128xf32, #tpu.memory_space<vmem>>, vector<1x8x128xf32>
    %11 = vector.shape_cast %10 : vector<1x8x128xf32> to vector<8x128xf32>
    %12 = arith.mulf %3, %11 : vector<8x128xf32>
    %13 = arith.mulf %5, %9 : vector<8x128xf32>
    %14 = arith.subf %12, %13 : vector<8x128xf32>
    %15 = arith.mulf %5, %7 : vector<8x128xf32>
    %16 = arith.mulf %1, %11 : vector<8x128xf32>
    %17 = arith.subf %15, %16 : vector<8x128xf32>
    %18 = arith.mulf %1, %9 : vector<8x128xf32>
    %19 = arith.mulf %3, %7 : vector<8x128xf32>
    %20 = arith.subf %18, %19 : vector<8x128xf32>
    %21 = arith.mulf %14, %14 : vector<8x128xf32>
    %22 = arith.mulf %17, %17 : vector<8x128xf32>
    %23 = arith.addf %21, %22 : vector<8x128xf32>
    %24 = arith.mulf %20, %20 : vector<8x128xf32>
    %25 = arith.addf %23, %24 : vector<8x128xf32>
    %cst = arith.constant 1.000000e-24 : f32
    %26 = vector.broadcast %cst : f32 to vector<8x128xf32>
    %27 = arith.maximumf %25, %26 : vector<8x128xf32>
    %28 = math.rsqrt %27 : vector<8x128xf32>
    %29 = arith.mulf %14, %28 : vector<8x128xf32>
    %30 = arith.mulf %17, %28 : vector<8x128xf32>
    %31 = arith.mulf %20, %28 : vector<8x128xf32>
    %c0_12 = arith.constant 0 : index
    %c0_13 = arith.constant 0 : index
    %c0_14 = arith.constant 0 : index
    %32 = vector.load %arg2[%c0_12, %c0_13, %c0_14] : memref<8x8x128xf32, #tpu.memory_space<vmem>>, vector<1x8x128xf32>
    %33 = vector.shape_cast %32 : vector<1x8x128xf32> to vector<8x128xf32>
    %34 = vector.shape_cast %29 : vector<8x128xf32> to vector<1x8x128xf32>
    tpu.vector_store %arg2[%c0_12, %c0_13, %c0_14], %34 {strides = array<i32>} : memref<8x8x128xf32, #tpu.memory_space<vmem>>, vector<1x8x128xf32>,
    %c1_15 = arith.constant 1 : index
    %c0_16 = arith.constant 0 : index
    %c0_17 = arith.constant 0 : index
    %35 = vector.load %arg2[%c1_15, %c0_16, %c0_17] : memref<8x8x128xf32, #tpu.memory_space<vmem>>, vector<1x8x128xf32>
    %36 = vector.shape_cast %35 : vector<1x8x128xf32> to vector<8x128xf32>
    %37 = vector.shape_cast %30 : vector<8x128xf32> to vector<1x8x128xf32>
    tpu.vector_store %arg2[%c1_15, %c0_16, %c0_17], %37 {strides = array<i32>} : memref<8x8x128xf32, #tpu.memory_space<vmem>>, vector<1x8x128xf32>,
    %c2_18 = arith.constant 2 : index
    %c0_19 = arith.constant 0 : index
    %c0_20 = arith.constant 0 : index
    %38 = vector.load %arg2[%c2_18, %c0_19, %c0_20] : memref<8x8x128xf32, #tpu.memory_space<vmem>>, vector<1x8x128xf32>
    %39 = vector.shape_cast %38 : vector<1x8x128xf32> to vector<8x128xf32>
    %40 = vector.shape_cast %31 : vector<8x128xf32> to vector<1x8x128xf32>
    tpu.vector_store %arg2[%c2_18, %c0_19, %c0_20], %40 {strides = array<i32>} : memref<8x8x128xf32, #tpu.memory_space<vmem>>, vector<1x8x128xf32>,
    %41 = arith.mulf %1, %1 : vector<8x128xf32>
    %42 = arith.mulf %3, %3 : vector<8x128xf32>
    %43 = arith.addf %41, %42 : vector<8x128xf32>
    %44 = arith.mulf %5, %5 : vector<8x128xf32>
    %45 = arith.addf %43, %44 : vector<8x128xf32>
    %46 = arith.mulf %1, %7 : vector<8x128xf32>
    %47 = arith.mulf %3, %9 : vector<8x128xf32>
    %48 = arith.addf %46, %47 : vector<8x128xf32>
    %49 = arith.mulf %5, %11 : vector<8x128xf32>
    %50 = arith.addf %48, %49 : vector<8x128xf32>
    %51 = arith.mulf %7, %7 : vector<8x128xf32>
    %52 = arith.mulf %9, %9 : vector<8x128xf32>
    %53 = arith.addf %51, %52 : vector<8x128xf32>
    %54 = arith.mulf %11, %11 : vector<8x128xf32>
    %55 = arith.addf %53, %54 : vector<8x128xf32>
    %c3_21 = arith.constant 3 : index
    %c0_22 = arith.constant 0 : index
    %c0_23 = arith.constant 0 : index
    %56 = vector.load %arg2[%c3_21, %c0_22, %c0_23] : memref<8x8x128xf32, #tpu.memory_space<vmem>>, vector<1x8x128xf32>
    %57 = vector.shape_cast %56 : vector<1x8x128xf32> to vector<8x128xf32>
    %58 = vector.shape_cast %45 : vector<8x128xf32> to vector<1x8x128xf32>
    tpu.vector_store %arg2[%c3_21, %c0_22, %c0_23], %58 {strides = array<i32>} : memref<8x8x128xf32, #tpu.memory_space<vmem>>, vector<1x8x128xf32>,
    %c4_24 = arith.constant 4 : index
    %c0_25 = arith.constant 0 : index
    %c0_26 = arith.constant 0 : index
    %59 = vector.load %arg2[%c4_24, %c0_25, %c0_26] : memref<8x8x128xf32, #tpu.memory_space<vmem>>, vector<1x8x128xf32>
    %60 = vector.shape_cast %59 : vector<1x8x128xf32> to vector<8x128xf32>
    %61 = vector.shape_cast %50 : vector<8x128xf32> to vector<1x8x128xf32>
    tpu.vector_store %arg2[%c4_24, %c0_25, %c0_26], %61 {strides = array<i32>} : memref<8x8x128xf32, #tpu.memory_space<vmem>>, vector<1x8x128xf32>,
    %c5_27 = arith.constant 5 : index
    %c0_28 = arith.constant 0 : index
    %c0_29 = arith.constant 0 : index
    %62 = vector.load %arg2[%c5_27, %c0_28, %c0_29] : memref<8x8x128xf32, #tpu.memory_space<vmem>>, vector<1x8x128xf32>
    %63 = vector.shape_cast %62 : vector<1x8x128xf32> to vector<8x128xf32>
    %64 = vector.shape_cast %55 : vector<8x128xf32> to vector<1x8x128xf32>
    tpu.vector_store %arg2[%c5_27, %c0_28, %c0_29], %64 {strides = array<i32>} : memref<8x8x128xf32, #tpu.memory_space<vmem>>, vector<1x8x128xf32>,
    %c6 = arith.constant 6 : index
    %c0_30 = arith.constant 0 : index
    %c0_31 = arith.constant 0 : index
    %65 = vector.load %arg1[%c6, %c0_30, %c0_31] : memref<15x8x128xf32, #tpu.memory_space<vmem>>, vector<1x8x128xf32>
    %66 = vector.shape_cast %65 : vector<1x8x128xf32> to vector<8x128xf32>
    %c7 = arith.constant 7 : index
    %c0_32 = arith.constant 0 : index
    %c0_33 = arith.constant 0 : index
    %67 = vector.load %arg1[%c7, %c0_32, %c0_33] : memref<15x8x128xf32, #tpu.memory_space<vmem>>, vector<1x8x128xf32>
    %68 = vector.shape_cast %67 : vector<1x8x128xf32> to vector<8x128xf32>
    %c8 = arith.constant 8 : index
    %c0_34 = arith.constant 0 : index
    %c0_35 = arith.constant 0 : index
    %69 = vector.load %arg1[%c8, %c0_34, %c0_35] : memref<15x8x128xf32, #tpu.memory_space<vmem>>, vector<1x8x128xf32>
    %70 = vector.shape_cast %69 : vector<1x8x128xf32> to vector<8x128xf32>
    %c9 = arith.constant 9 : index
    %c0_36 = arith.constant 0 : index
    %c0_37 = arith.constant 0 : index
    %71 = vector.load %arg1[%c9, %c0_36, %c0_37] : memref<15x8x128xf32, #tpu.memory_space<vmem>>, vector<1x8x128xf32>
    %72 = vector.shape_cast %71 : vector<1x8x128xf32> to vector<8x128xf32>
    %c10 = arith.constant 10 : index
    %c0_38 = arith.constant 0 : index
    %c0_39 = arith.constant 0 : index
    %73 = vector.load %arg1[%c10, %c0_38, %c0_39] : memref<15x8x128xf32, #tpu.memory_space<vmem>>, vector<1x8x128xf32>
    %74 = vector.shape_cast %73 : vector<1x8x128xf32> to vector<8x128xf32>
    %c11 = arith.constant 11 : index
    %c0_40 = arith.constant 0 : index
    %c0_41 = arith.constant 0 : index
    %75 = vector.load %arg1[%c11, %c0_40, %c0_41] : memref<15x8x128xf32, #tpu.memory_space<vmem>>, vector<1x8x128xf32>
    %76 = vector.shape_cast %75 : vector<1x8x128xf32> to vector<8x128xf32>
    %c12 = arith.constant 12 : index
    %c0_42 = arith.constant 0 : index
    %c0_43 = arith.constant 0 : index
    %77 = vector.load %arg1[%c12, %c0_42, %c0_43] : memref<15x8x128xf32, #tpu.memory_space<vmem>>, vector<1x8x128xf32>
    %78 = vector.shape_cast %77 : vector<1x8x128xf32> to vector<8x128xf32>
    %c13 = arith.constant 13 : index
    %c0_44 = arith.constant 0 : index
    %c0_45 = arith.constant 0 : index
    %79 = vector.load %arg1[%c13, %c0_44, %c0_45] : memref<15x8x128xf32, #tpu.memory_space<vmem>>, vector<1x8x128xf32>
    %80 = vector.shape_cast %79 : vector<1x8x128xf32> to vector<8x128xf32>
    %c14 = arith.constant 14 : index
    %c0_46 = arith.constant 0 : index
    %c0_47 = arith.constant 0 : index
    %81 = vector.load %arg1[%c14, %c0_46, %c0_47] : memref<15x8x128xf32, #tpu.memory_space<vmem>>, vector<1x8x128xf32>
    %82 = vector.shape_cast %81 : vector<1x8x128xf32> to vector<8x128xf32>
    %83 = arith.mulf %45, %55 : vector<8x128xf32>
    %84 = arith.mulf %50, %50 : vector<8x128xf32>
    %85 = arith.subf %83, %84 : vector<8x128xf32>
    %cst_48 = arith.constant 1.000000e+00 : f32
    %86 = vector.broadcast %cst_48 : f32 to vector<8x128xf32>
    %87 = arith.divf %86, %85 : vector<8x128xf32>
    %88 = arith.mulf %66, %55 : vector<8x128xf32>
    %cst_49 = arith.constant 2.000000e+00 : f32
    %89 = vector.broadcast %cst_49 : f32 to vector<8x128xf32>
    %90 = arith.mulf %89, %72 : vector<8x128xf32>
    %91 = arith.mulf %90, %50 : vector<8x128xf32>
    %92 = arith.subf %88, %91 : vector<8x128xf32>
    %93 = arith.mulf %78, %45 : vector<8x128xf32>
    %94 = arith.addf %92, %93 : vector<8x128xf32>
    %95 = arith.mulf %68, %55 : vector<8x128xf32>
    %cst_50 = arith.constant 2.000000e+00 : f32
    %96 = vector.broadcast %cst_50 : f32 to vector<8x128xf32>
    %97 = arith.mulf %96, %74 : vector<8x128xf32>
    %98 = arith.mulf %97, %50 : vector<8x128xf32>
    %99 = arith.subf %95, %98 : vector<8x128xf32>
    %100 = arith.mulf %80, %45 : vector<8x128xf32>
    %101 = arith.addf %99, %100 : vector<8x128xf32>
    %102 = arith.mulf %70, %55 : vector<8x128xf32>
    %cst_51 = arith.constant 2.000000e+00 : f32
    %103 = vector.broadcast %cst_51 : f32 to vector<8x128xf32>
    %104 = arith.mulf %103, %76 : vector<8x128xf32>
    %105 = arith.mulf %104, %50 : vector<8x128xf32>
    %106 = arith.subf %102, %105 : vector<8x128xf32>
    %107 = arith.mulf %82, %45 : vector<8x128xf32>
    %108 = arith.addf %106, %107 : vector<8x128xf32>
    %cst_52 = arith.constant -5.000000e-01 : f32
    %109 = vector.broadcast %cst_52 : f32 to vector<8x128xf32>
    %110 = arith.mulf %109, %87 : vector<8x128xf32>
    %111 = arith.mulf %29, %94 : vector<8x128xf32>
    %112 = arith.mulf %30, %101 : vector<8x128xf32>
    %113 = arith.addf %111, %112 : vector<8x128xf32>
    %114 = arith.mulf %31, %108 : vector<8x128xf32>
    %115 = arith.addf %113, %114 : vector<8x128xf32>
    %116 = arith.mulf %110, %115 : vector<8x128xf32>
    %c6_53 = arith.constant 6 : index
    %c0_54 = arith.constant 0 : index
    %c0_55 = arith.constant 0 : index
    %117 = vector.load %arg2[%c6_53, %c0_54, %c0_55] : memref<8x8x128xf32, #tpu.memory_space<vmem>>, vector<1x8x128xf32>
    %118 = vector.shape_cast %117 : vector<1x8x128xf32> to vector<8x128xf32>
    %119 = vector.shape_cast %116 : vector<8x128xf32> to vector<1x8x128xf32>
    tpu.vector_store %arg2[%c6_53, %c0_54, %c0_55], %119 {strides = array<i32>} : memref<8x8x128xf32, #tpu.memory_space<vmem>>, vector<1x8x128xf32>,
    %120 = arith.mulf %66, %29 : vector<8x128xf32>
    %121 = arith.mulf %68, %30 : vector<8x128xf32>
    %122 = arith.addf %120, %121 : vector<8x128xf32>
    %123 = arith.mulf %70, %31 : vector<8x128xf32>
    %124 = arith.addf %122, %123 : vector<8x128xf32>
    %125 = arith.mulf %72, %29 : vector<8x128xf32>
    %126 = arith.mulf %74, %30 : vector<8x128xf32>
    %127 = arith.addf %125, %126 : vector<8x128xf32>
    %128 = arith.mulf %76, %31 : vector<8x128xf32>
    %129 = arith.addf %127, %128 : vector<8x128xf32>
    %130 = arith.mulf %78, %29 : vector<8x128xf32>
    %131 = arith.mulf %80, %30 : vector<8x128xf32>
    %132 = arith.addf %130, %131 : vector<8x128xf32>
    %133 = arith.mulf %82, %31 : vector<8x128xf32>
    %134 = arith.addf %132, %133 : vector<8x128xf32>
    %135 = arith.mulf %124, %134 : vector<8x128xf32>
    %136 = arith.mulf %129, %129 : vector<8x128xf32>
    %137 = arith.subf %135, %136 : vector<8x128xf32>
    %138 = arith.mulf %45, %50 : vector<8x128xf32>
    %139 = arith.mulf %55, %55 : vector<8x128xf32>
    %140 = arith.subf %138, %139 : vector<8x128xf32>
    %141 = arith.divf %137, %140 : vector<8x128xf32>
    %c7_56 = arith.constant 7 : index
    %c0_57 = arith.constant 0 : index
    %c0_58 = arith.constant 0 : index
    %142 = vector.load %arg2[%c7_56, %c0_57, %c0_58] : memref<8x8x128xf32, #tpu.memory_space<vmem>>, vector<1x8x128xf32>
    %143 = vector.shape_cast %142 : vector<1x8x128xf32> to vector<8x128xf32>
    %144 = vector.shape_cast %141 : vector<8x128xf32> to vector<1x8x128xf32>
    tpu.vector_store %arg2[%c7_56, %c0_57, %c0_58], %144 {strides = array<i32>} : memref<8x8x128xf32, #tpu.memory_space<vmem>>, vector<1x8x128xf32>,
    return
  }
  func.func @transform_0(%arg0: i32) -> (i32, i32, i32) {
    %c0_i32 = arith.constant 0 : i32
    %c0_i32_0 = arith.constant 0 : i32
    %c0_i32_1 = arith.constant 0 : i32
    return %c0_i32, %arg0, %c0_i32_0 : i32, i32, i32
  }
  func.func @transform_1(%arg0: i32) -> (i32, i32, i32) {
    %c0_i32 = arith.constant 0 : i32
    %c0_i32_0 = arith.constant 0 : i32
    %c0_i32_1 = arith.constant 0 : i32
    return %c0_i32, %arg0, %c0_i32_0 : i32, i32, i32
  }
}

</mosaic_0001>

<llo_original>
// kernel: tpu_custom_call.1
$region0: #{tpu_custom_call.1}
  #allocation0 [shape = 'u32[]', space=smem, size = 0x4, offset = 0x4, fixed_abs, tag = 'smem constant byte address 0x4 - core index']
  #allocation1 [shape = 'u32[72,128]{1,0:T(1,128)}', space=vmem, size = 0x9000, scoped, tag = 'internal scratch']
  %s0 = inlined_call_operand.hbm [shape: f32[15,8,128], index: 0, kind: input, shape index: {}]
  %s1 = inlined_call_operand.hbm [shape: f32[8,8,128], index: 1, kind: output, shape index: {}]
  %s2 = sld [smem:[#allocation0]]
  $region18: #{tpu_custom_call.1} parent=0
    _
  %s4 = ssub.s32 1, %s2
  %s5 = scalar_select 0, %s4, %s2
  $region1: #{tpu_custom_call.1} parent=0
    #allocation2 [shape = 'u8[61440]{0}', space=vmem, size = 0xf000, scoped, tag = 'input window, operand 0, single buffered']
    #allocation3 [shape = 's32[1]{0}', space=sflag, size = 0x4, scoped, tag = 'scoped memory for tpu_custom_call.1']
    #allocation4 [shape = 's32[1]{0}', space=sflag, size = 0x4, scoped, tag = 'scoped memory for tpu_custom_call.1']
    #allocation5 [shape = 'u8[32768]{0}', space=vmem, size = 0x8000, scoped, tag = 'output window, operand 0, single buffered']
    %6 = vsyncpa [#allocation3], 0
    %7 = vsyncpa [#allocation4], 0
    // Predicated region
    $region2: #{tpu_custom_call.1} parent=1 // pred_check
      _
    $region3: #{tpu_custom_call.1} parent=1 // pred_check_branch
      %9 = sbr.rel (0) target = $region5
    $region4: #{tpu_custom_call.1} parent=1 // pred_region
      %11 = vsyncadd [#allocation3], 0
      %s12 = sshll.u32 %s0, 4
      %s13 = int_to_ptr.hbm [resolvable:$true] %s12
      %s14 = sshll.u32 [#allocation2], 4
      %s15 = int_to_ptr.vmem [resolvable:$true] %s14
      %20 = dma.hbm_to_vmem [thread:$0]  %s13, 1920, %s15, [#allocation3], 128, 128, 8
    $region5: #{tpu_custom_call.1} parent=1 // pred_fallthru
      _
    // Predicated region
    $region6: #{tpu_custom_call.1} parent=1 // pred_check
      _
    $region7: #{tpu_custom_call.1} parent=1 // pred_check_branch
      %22 = sbr.rel (0) target = $region9
    $region8: #{tpu_custom_call.1} parent=1 // pred_region
      %24 = dma.done [#allocation3], 1920
    $region9: #{tpu_custom_call.1} parent=1 // pred_fallthru
      _
    %v25 = vld [vmem:[#allocation2] sm:$0xff]
    %s26 = scalar_lea.vmem [#allocation2], 8
    %v27 = vld [vmem:[%s26] sm:$0xff]
    %s28 = scalar_lea.vmem [#allocation2], 16
    %v29 = vld [vmem:[%s28] sm:$0xff]
    %s30 = scalar_lea.vmem [#allocation2], 24
    %v31 = vld [vmem:[%s30] sm:$0xff]
    %s32 = scalar_lea.vmem [#allocation2], 32
    %v33 = vld [vmem:[%s32] sm:$0xff]
    %s34 = scalar_lea.vmem [#allocation2], 40
    %v35 = vld [vmem:[%s34] sm:$0xff]
    %v36 = vmul.f32 %v27, %v35
    %v37 = vmul.f32 %v29, %v33
    %v38 = vsub.f32 %v36, %v37
    %v39 = vmul.f32 %v29, %v31
    %v40 = vmul.f32 %v25, %v35
    %v41 = vsub.f32 %v39, %v40
    %v42 = vmul.f32 %v25, %v33
    %v43 = vmul.f32 %v27, %v31
    %v44 = vsub.f32 %v42, %v43
    %v45 = vmul.f32 %v38, %v38
    %v46 = vmul.f32 %v41, %v41
    %v47 = vadd.f32 %v45, %v46
    %v48 = vmul.f32 %v44, %v44
    %v49 = vadd.f32 %v47, %v48
    %v50 = vmax.f32 %v49, 1e-24
    %v51 = vrsqrt.pop %v50
    %v52 = vmul.f32 %v51, %v50
    %v53 = vmul.f32 %v52, %v51
    %v54 = vmul.f32 0.5, %v53
    %v55 = vsub.f32 1.5, %v54
    %v56 = vmul.f32 %v51, %v55
    %vm57 = vweird.f32 %v50
    %vm58 = vweird.f32 %v51
    %vm59 = vmor %vm57, %vm58
    %v60 = vsel %vm59, %v51, %v56
    %v61 = vmul.f32 %v38, %v60
    %v62 = vmul.f32 %v41, %v60
    %v63 = vmul.f32 %v44, %v60
    %64 = vst [vmem:[#allocation5] sm:$0xff] %v61
    %s65 = scalar_lea.vmem [#allocation5], 8
    %66 = vst [vmem:[%s65] sm:$0xff] %v62
    %s67 = scalar_lea.vmem [#allocation5], 16
    %68 = vst [vmem:[%s67] sm:$0xff] %v63
    %v69 = vmul.f32 %v25, %v25
    %v70 = vmul.f32 %v27, %v27
    %v71 = vadd.f32 %v69, %v70
    %v72 = vmul.f32 %v29, %v29
    %v73 = vadd.f32 %v71, %v72
    %v74 = vmul.f32 %v25, %v31
    %v75 = vmul.f32 %v27, %v33
    %v76 = vadd.f32 %v74, %v75
    %v77 = vmul.f32 %v29, %v35
    %v78 = vadd.f32 %v76, %v77
    %v79 = vmul.f32 %v31, %v31
    %v80 = vmul.f32 %v33, %v33
    %v81 = vadd.f32 %v79, %v80
    %v82 = vmul.f32 %v35, %v35
    %v83 = vadd.f32 %v81, %v82
    %s84 = scalar_lea.vmem [#allocation5], 24
    %85 = vst [vmem:[%s84] sm:$0xff] %v73
    %s86 = scalar_lea.vmem [#allocation5], 32
    %87 = vst [vmem:[%s86] sm:$0xff] %v78
    %s88 = scalar_lea.vmem [#allocation5], 40
    %89 = vst [vmem:[%s88] sm:$0xff] %v83
    %s90 = scalar_lea.vmem [#allocation2], 48
    %v91 = vld [vmem:[%s90] sm:$0xff]
    %s92 = scalar_lea.vmem [#allocation2], 56
    %v93 = vld [vmem:[%s92] sm:$0xff]
    %s94 = scalar_lea.vmem [#allocation2], 64
    %v95 = vld [vmem:[%s94] sm:$0xff]
    %s96 = scalar_lea.vmem [#allocation2], 72
    %v97 = vld [vmem:[%s96] sm:$0xff]
    %s98 = scalar_lea.vmem [#allocation2], 80
    %v99 = vld [vmem:[%s98] sm:$0xff]
    %s100 = scalar_lea.vmem [#allocation2], 88
    %v101 = vld [vmem:[%s100] sm:$0xff]
    %s102 = scalar_lea.vmem [#allocation2], 96
    %v103 = vld [vmem:[%s102] sm:$0xff]
    %s104 = scalar_lea.vmem [#allocation2], 104
    %v105 = vld [vmem:[%s104] sm:$0xff]
    %s106 = scalar_lea.vmem [#allocation2], 112
    %v107 = vld [vmem:[%s106] sm:$0xff]
    %v108 = vmul.f32 %v73, %v83
    %v109 = vmul.f32 %v78, %v78
    %v110 = vsub.f32 %v108, %v109
    %v111 = vrcp.pop %v110
    %v112 = vmul.f32 %v110, %v111
    %v113 = vsub.f32 1.0, %v112
    %v114 = vmul.f32 %v111, %v113
    %v115 = vadd.f32 %v111, %v114
    %vm116 = vweird.f32 %v110
    %vm117 = vweird.f32 %v111
    %vm118 = vmor %vm116, %vm117
    %v119 = vsel %vm118, %v111, %v115
    %v120 = vand.u32 2147483647, %v110
    %vm121 = vcmp.eq.f32.partialorder %v120, 8.507059e+37
    %v122 = vand.u32 %v110, 2147483648
    %v123 = vor.u32 1.1754944e-38, %v122
    %v124 = vsel %vm121, %v123, %v119
    %v125 = vmul.f32 1.0, %v124
    %v126 = vmul.f32 %v91, %v83
    %v127 = vmul.f32 %v97, 2.0
    %v128 = vmul.f32 %v127, %v78
    %v129 = vsub.f32 %v126, %v128
    %v130 = vmul.f32 %v103, %v73
    %v131 = vadd.f32 %v129, %v130
    %v132 = vmul.f32 %v93, %v83
    %v133 = vmul.f32 %v99, 2.0
    %v134 = vmul.f32 %v133, %v78
    %v135 = vsub.f32 %v132, %v134
    %v136 = vmul.f32 %v105, %v73
    %v137 = vadd.f32 %v135, %v136
    %v138 = vmul.f32 %v95, %v83
    %v139 = vmul.f32 %v101, 2.0
    %v140 = vmul.f32 %v139, %v78
    %v141 = vsub.f32 %v138, %v140
    %v142 = vmul.f32 %v107, %v73
    %v143 = vadd.f32 %v141, %v142
    %v144 = vmul.f32 %v125, -0.5
    %v145 = vmul.f32 %v61, %v131
    %v146 = vmul.f32 %v62, %v137
    %v147 = vadd.f32 %v145, %v146
    %v148 = vmul.f32 %v63, %v143
    %v149 = vadd.f32 %v147, %v148
    %v150 = vmul.f32 %v144, %v149
    %s151 = scalar_lea.vmem [#allocation5], 48
    %152 = vst [vmem:[%s151] sm:$0xff] %v150
    %v153 = vmul.f32 %v91, %v61
    %v154 = vmul.f32 %v93, %v62
    %v155 = vadd.f32 %v153, %v154
    %v156 = vmul.f32 %v95, %v63
    %v157 = vadd.f32 %v155, %v156
    %v158 = vmul.f32 %v97, %v61
    %v159 = vmul.f32 %v99, %v62
    %v160 = vadd.f32 %v158, %v159
    %v161 = vmul.f32 %v101, %v63
    %v162 = vadd.f32 %v160, %v161
    %v163 = vmul.f32 %v103, %v61
    %v164 = vmul.f32 %v105, %v62
    %v165 = vadd.f32 %v163, %v164
    %v166 = vmul.f32 %v107, %v63
    %v167 = vadd.f32 %v165, %v166
    %v168 = vmul.f32 %v157, %v167
    %v169 = vmul.f32 %v162, %v162
    %v170 = vsub.f32 %v168, %v169
    %v171 = vmul.f32 %v73, %v78
    %v172 = vmul.f32 %v83, %v83
    %v173 = vsub.f32 %v171, %v172
    %v174 = vrcp.pop %v173
    %v175 = vmul.f32 %v173, %v174
    %v176 = vsub.f32 1.0, %v175
    %v177 = vmul.f32 %v174, %v176
    %v178 = vadd.f32 %v174, %v177
    %vm179 = vweird.f32 %v173
    %vm180 = vweird.f32 %v174
    %vm181 = vmor %vm179, %vm180
    %v182 = vsel %vm181, %v174, %v178
    %v183 = vand.u32 2147483647, %v173
    %vm184 = vcmp.eq.f32.partialorder %v183, 8.507059e+37
    %v185 = vand.u32 %v173, 2147483648
    %v186 = vor.u32 1.1754944e-38, %v185
    %v187 = vsel %vm184, %v186, %v182
    %v188 = vmul.f32 %v170, %v187
    %s189 = scalar_lea.vmem [#allocation5], 56
    %190 = vst [vmem:[%s189] sm:$0xff] %v188
    // Predicated region
    $region10: #{tpu_custom_call.1} parent=1 // pred_check
      _
    $region11: #{tpu_custom_call.1} parent=1 // pred_check_branch
      %192 = sbr.rel (0) target = $region13
    $region12: #{tpu_custom_call.1} parent=1 // pred_region
      %194 = vsyncadd [#allocation4], 0
      %s195 = sshll.u32 [#allocation5], 4
      %s196 = int_to_ptr.vmem [resolvable:$true] %s195
      %s197 = sshll.u32 %s1, 4
      %s198 = int_to_ptr.hbm [resolvable:$true] %s197
      %203 = dma.vmem_to_hbm [thread:$0]  %s196, 1024, %s198, [#allocation4], 128, 128, 8
    $region13: #{tpu_custom_call.1} parent=1 // pred_fallthru
      _
    // Predicated region
    $region14: #{tpu_custom_call.1} parent=1 // pred_check
      _
    $region15: #{tpu_custom_call.1} parent=1 // pred_check_branch
      %205 = sbr.rel (0) target = $region17
    $region16: #{tpu_custom_call.1} parent=1 // pred_region
      %207 = dma.done [#allocation4], 1024
    $region17: #{tpu_custom_call.1} parent=1 // pred_fallthru
      _
    %208 = vsyncpa [#allocation3], 1
    %209 = vsyncpa [#allocation4], 1

</llo_original>
